<compile_context>
chip_gen: v7x
topology: tpu7x:2x2x1
jax: 0.10.0
libtpu: 0.0.40
codegen_flags: <defaults>
</compile_context>

<pallas_src>
import functools

import jax
import jax.numpy as jnp
from jax.experimental import pallas as pl
from jax.experimental.pallas import tpu as pltpu


def _round_up(n, m):
    return ((n + m - 1) // m) * m


# ---------------------------------------------------------------------------
# Pass 1: per-class feature sums + per-class counts (reduction over batch tiles)
# ---------------------------------------------------------------------------
def class_sum_kernel(x_ref, t_ref, sums_ref, counts_ref, *, nc):
    step = pl.program_id(0)

    @pl.when(step == 0)
    def _init():
        sums_ref[...] = jnp.zeros_like(sums_ref)
        counts_ref[...] = jnp.zeros_like(counts_ref)

    x = x_ref[...]                                              # (tb, D), native dtype
    t = t_ref[...]                                              # (tb, 1) int32
    tb = x.shape[0]

    class_ids = jax.lax.broadcasted_iota(jnp.int32, (tb, nc), 1)
    onehot = (class_ids == t).astype(jnp.float32)               # (tb, nc), exact 0/1
    counts_ref[...] += jnp.sum(onehot, axis=0, keepdims=True)   # (1, nc)

    # class sums: (nc, D) = onehot.T @ x  (contract over the tile's rows, K = tb)
    sums_ref[...] += jax.lax.dot_general(
        onehot.astype(x.dtype), x, (((0,), (0,)), ((), ())),
        preferred_element_type=jnp.float32)


# ---------------------------------------------------------------------------
# Pass 2: per-tile partial sum of (1 - cosine(x_b, class_mean[t_b]))
# ---------------------------------------------------------------------------
def cos_partial_kernel(sums_ref, counts_ref, x_ref, t_ref, out_ref, *,
                       nc, batch, tile_b):
    step = pl.program_id(0)

    x = x_ref[...].astype(jnp.float32)                          # (tb, D)
    t = t_ref[...]                                              # (tb, 1) int32
    tb, d = x.shape

    # nc exact reciprocals instead of B*nc divides.
    inv = pl.reciprocal(counts_ref[...] + 1e-8)                 # (1, nc)

    # m[b] = class_sum[t_b] * inv[t_b]  — pure VPU select, no K=nc MXU contraction.
    m = jnp.zeros((tb, d), jnp.float32)
    for i in range(nc):                                         # nc is small & static
        mean_i = sums_ref[i:i + 1, :] * inv[:, i:i + 1]         # (1, D)
        m = m + jnp.where(t == i, 1.0, 0.0) * mean_i            # (tb,1)*(1,D) broadcast

    w12 = jnp.sum(x * m, axis=1, keepdims=True)                 # (tb, 1)
    w1 = jnp.sum(x * x, axis=1, keepdims=True)
    w2 = jnp.sum(m * m, axis=1, keepdims=True)
    # max(sqrt(z), 1e-6) == sqrt(max(z, 1e-12)); fuse sqrt + divide into one rsqrt.
    cos = w12 * jax.lax.rsqrt(jnp.maximum(w1 * w2, 1e-12))

    # Mask padded rows so they do not contribute to the mean.
    row = step * tile_b + jax.lax.broadcasted_iota(jnp.int32, (tb, 1), 0)
    valid = jnp.where(row < batch, 1.0, 0.0)
    out_ref[...] = jnp.sum((1.0 - cos) * valid, axis=0, keepdims=True)   # (1, 1)


def cos_loss(x, target, nc=2, tile_b=512):
    """loss = mean_b(1 - cos(x_b, class_mean[target_b])); matches CosLoss.forward."""
    B, D = x.shape
    t = target.reshape(B, 1).astype(jnp.int32)

    tb = min(tile_b, _round_up(B, 8))        # batch tile (multiple of 8); lower on v5e if D is huge
    Bp = _round_up(B, tb)
    num_tiles = Bp // tb
    if Bp != B:
        # Padded rows get class id `nc` (out of range) -> zero one-hot row in pass 1,
        # and are masked out of the loss sum in pass 2.
        x = jnp.pad(x, ((0, Bp - B), (0, 0)))
        t = jnp.pad(t, ((0, Bp - B), (0, 0)), constant_values=nc)

    # ---- pass 1: class sums + counts (resident accumulator outputs, reduction axis) ----
    sums, counts = pl.pallas_call(
        functools.partial(class_sum_kernel, nc=nc),
        out_shape=(jax.ShapeDtypeStruct((nc, D), jnp.float32),
                   jax.ShapeDtypeStruct((1, nc), jnp.float32)),
        grid=(num_tiles,),
        in_specs=[pl.BlockSpec((tb, D), lambda i: (i, 0)),
                  pl.BlockSpec((tb, 1), lambda i: (i, 0))],
        out_specs=(pl.BlockSpec((nc, D), lambda i: (0, 0)),
                   pl.BlockSpec((1, nc), lambda i: (0, 0))),
        compiler_params=pltpu.CompilerParams(
            dimension_semantics=("arbitrary",)),
    )(x, t)

    # ---- pass 2: streamed cosine, one partial sum per batch tile (parallel axis) ----
    partials = pl.pallas_call(
        functools.partial(cos_partial_kernel, nc=nc, batch=B, tile_b=tb),
        out_shape=jax.ShapeDtypeStruct((num_tiles, 1), jnp.float32),
        grid=(num_tiles,),
        in_specs=[pl.BlockSpec((nc, D), lambda i: (0, 0)),
                  pl.BlockSpec((1, nc), lambda i: (0, 0)),
                  pl.BlockSpec((tb, D), lambda i: (i, 0)),
                  pl.BlockSpec((tb, 1), lambda i: (i, 0))],
        out_specs=pl.BlockSpec((1, 1), lambda i: (i, 0)),
        compiler_params=pltpu.CompilerParams(
            dimension_semantics=("parallel",)),
    )(sums, counts, x, t)

    return jnp.sum(partials) / jnp.float32(B)


def cos_loss_ref(x, target, nc=2):
    # Pure-JAX reference mirroring the PyTorch forward (materializes the B x B matrix).
    B = x.shape[0]
    xf = x.astype(jnp.float32)
    c = jnp.zeros((B, B), jnp.float32)
    for i in range(nc):
        eq = (target == i).astype(jnp.float32)
        mask = eq[None, :] * eq[:, None]
        num = jnp.sum(eq) + 1e-8
        c = c + mask / num
    m = c @ xf
    w12 = jnp.sum(xf * m, axis=1)
    denom = jnp.maximum(jnp.sqrt(jnp.sum(xf * xf, 1) * jnp.sum(m * m, 1)), 1e-6)
    return jnp.mean(1.0 - w12 / denom)


if __name__ == "__main__":
    key = jax.random.PRNGKey(0)
    kx, kt = jax.random.split(key)
    B, D, NC = 8, 32, 2
    x = jax.random.normal(kx, (B, D), dtype=jnp.float32)
    target = jax.random.randint(kt, (B,), 0, NC, dtype=jnp.int32)

    loss = cos_loss(x, target, nc=NC)
    jax.block_until_ready(loss)

    ref = cos_loss_ref(x, target, nc=NC)
    assert jnp.allclose(loss, ref, atol=1e-5, rtol=1e-5), (loss, ref)
    print("KERNEL_OK")
</pallas_src>

<mosaic_0001>
module attributes {stable_mosaic.version = 11 : i64} {
  func.func @class_sum_kernel(%arg0: i32, %arg1: memref<8x32xf32, #tpu.memory_space<vmem>>, %arg2: memref<8x1xi32, #tpu.memory_space<vmem>>, %arg3: memref<2x32xf32, #tpu.memory_space<vmem>>, %arg4: memref<1x2xf32, #tpu.memory_space<vmem>>) attributes {dimension_semantics = [#tpu.dimension_semantics<arbitrary>], iteration_bounds = array<i64: 1>, scalar_prefetch = 0 : i64, scratch_operands = 0 : i64, tpu.core_type = #tpu.core_type<tc>, window_params = [{transform_indices = @transform_0, window_bounds = array<i64: 8, 32>}, {transform_indices = @transform_1, window_bounds = array<i64: 8, 1>}, {pipeline_mode = #tpu.pipeline_mode<synchronous>, transform_indices = @transform_2, window_bounds = array<i64: 2, 32>}, {pipeline_mode = #tpu.pipeline_mode<synchronous>, transform_indices = @transform_3, window_bounds = array<i64: 1, 2>}]} {
    %c0_i32 = arith.constant 0 : i32
    %0 = arith.cmpi eq, %arg0, %c0_i32 : i32
    %1 = arith.extui %0 : i1 to i32
    %c0_i32_0 = arith.constant 0 : i32
    %2 = arith.cmpi ne, %1, %c0_i32_0 : i32
    scf.if %2 {
      %cst_13 = arith.constant 0.000000e+00 : f32
      %19 = vector.broadcast %cst_13 : f32 to vector<2x32xf32>
      %c0_14 = arith.constant 0 : index
      %c0_15 = arith.constant 0 : index
      %20 = vector.load %arg3[%c0_14, %c0_15] : memref<2x32xf32, #tpu.memory_space<vmem>>, vector<2x32xf32>
      tpu.vector_store %arg3[%c0_14, %c0_15], %19 {strides = array<i32>} : memref<2x32xf32, #tpu.memory_space<vmem>>, vector<2x32xf32>,
      %cst_16 = arith.constant 0.000000e+00 : f32
      %21 = vector.broadcast %cst_16 : f32 to vector<1x2xf32>
      %c0_17 = arith.constant 0 : index
      %c0_18 = arith.constant 0 : index
      %22 = vector.load %arg4[%c0_17, %c0_18] : memref<1x2xf32, #tpu.memory_space<vmem>>, vector<1x2xf32>
      tpu.vector_store %arg4[%c0_17, %c0_18], %21 {strides = array<i32>} : memref<1x2xf32, #tpu.memory_space<vmem>>, vector<1x2xf32>,
    } else {
    }
    %c0 = arith.constant 0 : index
    %c0_1 = arith.constant 0 : index
    %3 = vector.load %arg1[%c0, %c0_1] : memref<8x32xf32, #tpu.memory_space<vmem>>, vector<8x32xf32>
    %c0_2 = arith.constant 0 : index
    %c0_3 = arith.constant 0 : index
    %4 = vector.load %arg2[%c0_2, %c0_3] : memref<8x1xi32, #tpu.memory_space<vmem>>, vector<8x1xi32>
    %5 = tpu.iota {dimensions = array<i32: 1>} : vector<8x2xi32>
    %6 = vector.broadcast %4 : vector<8x1xi32> to vector<8x2xi32>
    %7 = arith.cmpi eq, %5, %6 : vector<8x2xi32>
    %8 = arith.extui %7 : vector<8x2xi1> to vector<8x2xi32>
    %9 = arith.sitofp %8 : vector<8x2xi32> to vector<8x2xf32>
    %c0_4 = arith.constant 0 : index
    %c0_5 = arith.constant 0 : index
    %10 = vector.load %arg4[%c0_4, %c0_5] : memref<1x2xf32, #tpu.memory_space<vmem>>, vector<1x2xf32>
    %cst = arith.constant dense<0.000000e+00> : vector<2xf32>
    %11 = vector.multi_reduction <add>, %9, %cst [0] : vector<8x2xf32> to vector<2xf32>
    %12 = vector.shape_cast %11 : vector<2xf32> to vector<1x2xf32>
    %13 = arith.addf %10, %12 : vector<1x2xf32>
    %c0_6 = arith.constant 0 : index
    %c0_7 = arith.constant 0 : index
    %14 = vector.load %arg4[%c0_6, %c0_7] : memref<1x2xf32, #tpu.memory_space<vmem>>, vector<1x2xf32>
    tpu.vector_store %arg4[%c0_6, %c0_7], %13 {strides = array<i32>} : memref<1x2xf32, #tpu.memory_space<vmem>>, vector<1x2xf32>,
    %c0_8 = arith.constant 0 : index
    %c0_9 = arith.constant 0 : index
    %15 = vector.load %arg3[%c0_8, %c0_9] : memref<2x32xf32, #tpu.memory_space<vmem>>, vector<2x32xf32>
    %cst_10 = arith.constant dense<0.000000e+00> : vector<2x32xf32>
    %16 = tpu.matmul %9, %3, %cst_10 {dimension_numbers = #tpu.dot_dimension_numbers<[0], [0], [1], [1], [0, 1, 1, 1], [], []>} : vector<8x2xf32>, vector<8x32xf32>, vector<2x32xf32> -> vector<2x32xf32>
    %17 = arith.addf %15, %16 : vector<2x32xf32>
    %c0_11 = arith.constant 0 : index
    %c0_12 = arith.constant 0 : index
    %18 = vector.load %arg3[%c0_11, %c0_12] : memref<2x32xf32, #tpu.memory_space<vmem>>, vector<2x32xf32>
    tpu.vector_store %arg3[%c0_11, %c0_12], %17 {strides = array<i32>} : memref<2x32xf32, #tpu.memory_space<vmem>>, vector<2x32xf32>,
    return
  }
  func.func @transform_0(%arg0: i32) -> (i32, i32) {
    %c0_i32 = arith.constant 0 : i32
    %c0_i32_0 = arith.constant 0 : i32
    return %arg0, %c0_i32 : i32, i32
  }
  func.func @transform_1(%arg0: i32) -> (i32, i32) {
    %c0_i32 = arith.constant 0 : i32
    %c0_i32_0 = arith.constant 0 : i32
    return %arg0, %c0_i32 : i32, i32
  }
  func.func @transform_2(%arg0: i32) -> (i32, i32) {
    %c0_i32 = arith.constant 0 : i32
    %c0_i32_0 = arith.constant 0 : i32
    %c0_i32_1 = arith.constant 0 : i32
    return %c0_i32, %c0_i32_0 : i32, i32
  }
  func.func @transform_3(%arg0: i32) -> (i32, i32) {
    %c0_i32 = arith.constant 0 : i32
    %c0_i32_0 = arith.constant 0 : i32
    %c0_i32_1 = arith.constant 0 : i32
    return %c0_i32, %c0_i32_0 : i32, i32
  }
}

</mosaic_0001>

<llo_original>
// kernel: tpu_custom_call.1
$region0: #{tpu_custom_call.1}
  #allocation0 [shape = 'u32[]', space=smem, size = 0x4, offset = 0x4, fixed_abs, tag = 'smem constant byte address 0x4 - core index']
  #allocation1 [shape = 'u32[144,128]{1,0:T(1,128)}', space=vmem, size = 0x12000, scoped, tag = 'internal scratch']
  %s0 = inlined_call_operand.vmem [shape: f32[8,32], index: 0, kind: input, shape index: {}]
  %s1 = inlined_call_operand.vmem [shape: s32[8,1], index: 1, kind: input, shape index: {}]
  %s2 = inlined_call_operand.hbm [shape: f32[2,32], index: 2, kind: output, shape index: {0}]
  %s3 = inlined_call_operand.hbm [shape: f32[1,2], index: 3, kind: output, shape index: {1}]
  %4 = xla_tuple %s2, %s3
  %s5 = sld [smem:[#allocation0]]
  $region30: #{tpu_custom_call.1} parent=0
    _
  %s7 = ssub.s32 1, %s5
  %s8 = scalar_select 0, %s7, %s5
  $region1: #{tpu_custom_call.1} parent=0
    #allocation2 [shape = 'u8[1024]{0}', space=vmem, size = 0x400, scoped, tag = 'output window, operand 0, single buffered']
    #allocation3 [shape = 's32[1]{0}', space=sflag, size = 0x4, scoped, tag = 'scoped memory for tpu_custom_call.1']
    #allocation4 [shape = 'u8[512]{0}', space=vmem, size = 0x400, scoped, tag = 'output window, operand 1, single buffered']
    #allocation5 [shape = 's32[1]{0}', space=sflag, size = 0x4, scoped, tag = 'scoped memory for tpu_custom_call.1']
    %9 = vsyncpa [#allocation3], 0
    %10 = vsyncpa [#allocation5], 0
    // Predicated region
    $region2: #{tpu_custom_call.1} parent=1 // pred_check
      _
    $region3: #{tpu_custom_call.1} parent=1 // pred_check_branch
      %12 = sbr.rel (0) target = $region5
    $region4: #{tpu_custom_call.1} parent=1 // pred_region
      _
    $region5: #{tpu_custom_call.1} parent=1 // pred_fallthru
      _
    // Predicated region
    $region6: #{tpu_custom_call.1} parent=1 // pred_check
      _
    $region7: #{tpu_custom_call.1} parent=1 // pred_check_branch
      %14 = sbr.rel (0) target = $region9
    $region8: #{tpu_custom_call.1} parent=1 // pred_region
      _
    $region9: #{tpu_custom_call.1} parent=1 // pred_fallthru
      _
    %p15 = scmp.eq.s32.totalorder 0, 0
    // Predicated region
    $region10: #{tpu_custom_call.1} parent=1 // pred_check
      %p16 = pneg %p15
    $region11: #{tpu_custom_call.1} parent=1 // pred_check_branch
      %18 = sbr.rel (%p16) target = $region13
    $region12: #{tpu_custom_call.1} parent=1 // pred_region
      %vm19 = vcmask 254976
      %20 = vst.msk [vmem:[#allocation2] sm:$0x3] %vm19, 0.0
      %vm21 = vcmask 8192
      %22 = vst.msk [vmem:[#allocation4] sm:$0x1] %vm21, 0.0
    $region13: #{tpu_custom_call.1} parent=1 // pred_fallthru
      _
    %v23 = vld [vmem:[%s0] sm:$0xff]
    %v24 = vld [vmem:[%s1] sm:$0xff]
    %v25 = vlaneseq
    %v26 = vand.u32 %v25, 127
    %27 = vset.pattern.permute.xlu0 0
    %28 = vperm.xlu0 %27, %v24
    %v29 = vpop.permute.xlu0 %28
    %vm30 = vcmp.eq.s32.totalorder %v26, %v29
    %v31 = vsel %vm30, 1, 0
    %v32 = vcvt.s32.f32 %v31
    %v33 = vld [vmem:[#allocation4] sm:$0x1]
    %vm34 = vcmask 15360
    %v35 = vsel %vm34, %v32, 0.0
    %v36 = vrot.slane %v35, 4
    %v37 = vadd.f32 %v35, %v36
    %v38 = vrot.slane %v37, 2
    %v39 = vadd.f32 %v37, %v38
    %v40 = vrot.slane %v39, 1
    %v41 = vadd.f32 %v39, %v40
    %v42 = vadd.f32 %v33, %v41
    %vm43 = vcmask 8192
    %44 = vst.msk [vmem:[#allocation4] sm:$0x1] %vm43, %v42
    %v45 = vld [vmem:[#allocation2] sm:$0x3]
    %46 = vxpose.xlu0.b32.start [1/16] %v32, 128
    %47 = vxpose.xlu0.b32.cont [2/16] 0.0, 128
    %48 = vxpose.xlu0.b32.cont [3/16] 0.0, 128
    %49 = vxpose.xlu0.b32.cont [4/16] 0.0, 128
    %50 = vxpose.xlu0.b32.cont [5/16] 0.0, 128
    %51 = vxpose.xlu0.b32.cont [6/16] 0.0, 128
    %52 = vxpose.xlu0.b32.cont [7/16] 0.0, 128
    %53 = vxpose.xlu0.b32.cont [8/16] 0.0, 128
    %54 = vxpose.xlu0.b32.cont [9/16] 0.0, 128
    %55 = vxpose.xlu0.b32.cont [10/16] 0.0, 128
    %56 = vxpose.xlu0.b32.cont [11/16] 0.0, 128
    %57 = vxpose.xlu0.b32.cont [12/16] 0.0, 128
    %58 = vxpose.xlu0.b32.cont [13/16] 0.0, 128
    %59 = vxpose.xlu0.b32.cont [14/16] 0.0, 128
    %60 = vxpose.xlu0.b32.cont [15/16] 0.0, 128
    %61 = vxpose.xlu0.b32.end [16/16] 0.0, 128
    %v62 = vpop.trf.xlu0
    %v63 = vpop.trf.xlu0
    %v64 = vpop.trf.xlu0
    %v65 = vpop.trf.xlu0
    %v66 = vpop.trf.xlu0
    %v67 = vpop.trf.xlu0
    %v68 = vpop.trf.xlu0
    %v69 = vpop.trf.xlu0
    %v70 = vpop.trf.xlu0
    %v71 = vpop.trf.xlu0
    %v72 = vpop.trf.xlu0
    %v73 = vpop.trf.xlu0
    %v74 = vpop.trf.xlu0
    %v75 = vpop.trf.xlu0
    %v76 = vpop.trf.xlu0
    %v77 = vpop.trf.xlu0
    %vm78 = vcmask 64512
    %v80 = vsel %vm78, %v62, 0
    %82 = vmatprep.subr.mxu0 0.0
    %83 = vmatpush1.msra.mxu0 %v23
    %84 = vmatprep.subr.mxu0 0.0
    %85 = vmatpush1.msra.mxu0 0.0
    %86 = vmatprep.subr.mxu0 0.0
    %87 = vmatpush1.msra.mxu0 0.0
    %88 = vmatprep.subr.mxu0 0.0
    %89 = vmatpush1.msra.mxu0 0.0
    %90 = vmatprep.subr.mxu0 0.0
    %91 = vmatpush1.msra.mxu0 0.0
    %92 = vmatprep.subr.mxu0 0.0
    %93 = vmatpush1.msra.mxu0 0.0
    %94 = vmatprep.subr.mxu0 0.0
    %95 = vmatpush1.msra.mxu0 0.0
    %96 = vmatprep.subr.mxu0 0.0
    %97 = vmatpush1.msra.mxu0 0.0
    %98 = vmatprep.subr.mxu0 0.0
    %99 = vmatpush1.msra.mxu0 0.0
    %100 = vmatprep.subr.mxu0 0.0
    %101 = vmatpush1.msra.mxu0 0.0
    %102 = vmatprep.subr.mxu0 0.0
    %103 = vmatpush1.msra.mxu0 0.0
    %104 = vmatprep.subr.mxu0 0.0
    %105 = vmatpush1.msra.mxu0 0.0
    %106 = vmatprep.subr.mxu0 0.0
    %107 = vmatpush1.msra.mxu0 0.0
    %108 = vmatprep.subr.mxu0 0.0
    %109 = vmatpush1.msra.mxu0 0.0
    %110 = vmatprep.subr.mxu0 0.0
    %111 = vmatpush1.msra.mxu0 0.0
    %112 = vmatprep.subr.mxu0 0.0
    %113 = vmatpush1.msra.mxu0 0.0
    %114 = vmatprep.subr.mxu0 0.0
    %115 = vmatpush1.msra.mxu0 0.0
    %116 = vmatprep.subr.mxu0 0.0
    %117 = vmatpush1.msra.mxu0 0.0
    %118 = vmatprep.subr.mxu0 0.0
    %119 = vmatpush1.msra.mxu0 0.0
    %120 = vmatprep.subr.mxu0 0.0
    %121 = vmatpush1.msra.mxu0 0.0
    %122 = vmatprep.subr.mxu0 0.0
    %123 = vmatpush1.msra.mxu0 0.0
    %124 = vmatprep.subr.mxu0 0.0
    %125 = vmatpush1.msra.mxu0 0.0
    %126 = vmatprep.subr.mxu0 0.0
    %127 = vmatpush1.msra.mxu0 0.0
    %128 = vmatprep.subr.mxu0 0.0
    %129 = vmatpush1.msra.mxu0 0.0
    %130 = vmatprep.subr.mxu0 0.0
    %131 = vmatpush1.msra.mxu0 0.0
    %132 = vmatprep.subr.mxu0 0.0
    %133 = vmatpush1.msra.mxu0 0.0
    %134 = vmatprep.subr.mxu0 0.0
    %135 = vmatpush1.msra.mxu0 0.0
    %136 = vmatprep.subr.mxu0 0.0
    %137 = vmatpush1.msra.mxu0 0.0
    %138 = vmatprep.subr.mxu0 0.0
    %139 = vmatpush1.msra.mxu0 0.0
    %140 = vmatprep.subr.mxu0 0.0
    %141 = vmatpush1.msra.mxu0 0.0
    %142 = vmatprep.subr.mxu0 0.0
    %143 = vmatpush1.msra.mxu0 0.0
    %144 = vmatprep.subr.mxu0 0.0
    %145 = vmatpush1.msra.mxu0 0.0
    %146 = vmatprep.mubr.f32.mxu0 0.0
    %147 = vmatmul.mubr.f32.gmra.mrb[0].mxu0 %v80
    %v148 = vpop.f32.mrb[0].mxu0
    %v149 = vadd.f32 0.0, %v148
    %v150 = vpop.f32.mrb[0].mxu0
    %151 = vdwg.mxu0
    %v152 = vadd.f32 %v45, %v149
    %vm153 = vcmask 254976
    %154 = vst.msk [vmem:[#allocation2] sm:$0x3] %vm153, %v152
    // Predicated region
    $region14: #{tpu_custom_call.1} parent=1 // pred_check
      _
    $region15: #{tpu_custom_call.1} parent=1 // pred_check_branch
      %156 = sbr.rel (0) target = $region17
    $region16: #{tpu_custom_call.1} parent=1 // pred_region
      %s158 = ssub.s32 32, 32
      %159 = vsyncadd [#allocation3], %s158
      %s161 = sshll.u32 [#allocation2], 4
      %s162 = int_to_ptr.vmem [resolvable:$true] %s161
      %164 = dma.vmem_to_hbm [thread:$0]  %s162, 32, %s2, [#allocation3]
    $region17: #{tpu_custom_call.1} parent=1 // pred_fallthru
      _
    // Predicated region
    $region18: #{tpu_custom_call.1} parent=1 // pred_check
      _
    $region19: #{tpu_custom_call.1} parent=1 // pred_check_branch
      %166 = sbr.rel (0) target = $region21
    $region20: #{tpu_custom_call.1} parent=1 // pred_region
      %s168 = ssub.s32 16, 16
      %169 = vsyncadd [#allocation5], %s168
      %s171 = sshll.u32 [#allocation4], 4
      %s172 = int_to_ptr.vmem [resolvable:$true] %s171
      %174 = dma.vmem_to_hbm [thread:$0]  %s172, 16, %s3, [#allocation5]
    $region21: #{tpu_custom_call.1} parent=1 // pred_fallthru
      _
    // Predicated region
    $region22: #{tpu_custom_call.1} parent=1 // pred_check
      _
    $region23: #{tpu_custom_call.1} parent=1 // pred_check_branch
      %176 = sbr.rel (0) target = $region25
    $region24: #{tpu_custom_call.1} parent=1 // pred_region
      %177 = dma.done [#allocation3], 32
    $region25: #{tpu_custom_call.1} parent=1 // pred_fallthru
      _
    // Predicated region
    $region26: #{tpu_custom_call.1} parent=1 // pred_check
      _
    $region27: #{tpu_custom_call.1} parent=1 // pred_check_branch
      %179 = sbr.rel (0) target = $region29
    $region28: #{tpu_custom_call.1} parent=1 // pred_region
      %180 = dma.done [#allocation5], 16
    $region29: #{tpu_custom_call.1} parent=1 // pred_fallthru
      _
    %181 = vsyncpa [#allocation3], 1
    %182 = vsyncpa [#allocation5], 1

</llo_original>
